<compile_context>
chip_gen: v7x
topology: tpu7x:2x2x1
jax: 0.10.0
libtpu: 0.0.40
codegen_flags: <defaults>
</compile_context>

<pallas_src>
import jax
import jax.numpy as jnp
from jax import lax
from jax.experimental import pallas as pl
from jax.experimental.pallas import tpu as pltpu

# ---------------- module-consistent config ----------------
BATCH = 2
IN_CHANNELS = 1            # Embeddings default in_channels=1 (non-hybrid path)
IMG_SIZE = 16
PATCH_SIZE = 4             # config.patches['size']
HIDDEN = 32                # config.hidden_size

GRID = IMG_SIZE // PATCH_SIZE
N_PATCHES = GRID * GRID
PATCH_DIM = IN_CHANNELS * PATCH_SIZE * PATCH_SIZE
K_DIM = IN_CHANNELS * IMG_SIZE * IMG_SIZE     # contraction depth after the fold (= 256)


# ---------------- kernel ----------------
def _embeddings_kernel(x_ref, w_ref, b_ref, o_ref):
    # x_ref: (B, C*H*W)        flattened image (patching + avg-pool folded into the weight)
    # w_ref: (C*H*W, HIDDEN)   conv weight tiled over the patch grid and pre-scaled by 1/N
    # b_ref: (1, HIDDEN)       conv bias
    y = jnp.dot(x_ref[...], w_ref[...], preferred_element_type=jnp.float32) + b_ref[...]
    o_ref[...] = y.astype(o_ref.dtype)


# ---------------- wrapper ----------------
@jax.jit
def embeddings_forward(x_nchw, w_full, patch_b):
    """Embeddings.forward (non-hybrid). Returns (embeddings, features=None)."""
    B, C, H, W = x_nchw.shape
    assert H % PATCH_SIZE == 0 and W % PATCH_SIZE == 0, "image dims must be multiples of P"
    k_dim = C * H * W

    # Contiguous reshape only (a bitcast — no transpose, no pad, no data movement).
    x_flat = x_nchw.reshape(B, k_dim)

    flops = 2 * B * k_dim * HIDDEN
    bytes_accessed = 4 * (x_flat.size + w_full.size + patch_b.size + B * HIDDEN)

    out = pl.pallas_call(
        _embeddings_kernel,
        out_shape=jax.ShapeDtypeStruct((B, HIDDEN), jnp.float32),
        in_specs=[pl.BlockSpec(memory_space=pltpu.MemorySpace.VMEM)] * 3,
        out_specs=pl.BlockSpec(memory_space=pltpu.MemorySpace.VMEM),
        cost_estimate=pl.CostEstimate(flops=flops, transcendentals=0,
                                      bytes_accessed=bytes_accessed),
    )(x_flat, w_full, patch_b)

    embeddings = out        # Dropout: identity at inference; no slicing needed
    features = None         # non-hybrid path
    return embeddings, features


# ---------------- deterministic parameter init ----------------
def init_params(key):
    kw, kb = jax.random.split(key)
    # Conv2d(in=C, out=HIDDEN, kernel=P, stride=P): weight (O, I, kH, kW)
    conv_w = 0.05 * jax.random.normal(
        kw, (HIDDEN, IN_CHANNELS, PATCH_SIZE, PATCH_SIZE), jnp.float32)
    # Fold AdaptiveAvgPool2d((1,1)) into the patch conv ONCE at init:
    #   W_full[o, c, h, w] = conv_w[o, c, h % P, w % P] / N_patches
    w_img = jnp.tile(conv_w, (1, 1, GRID, GRID)) / float(N_PATCHES)       # (O, C, H, W)
    w_full = w_img.reshape(HIDDEN, K_DIM).T                               # (C*H*W, HIDDEN)
    patch_b = 0.05 * jax.random.normal(kb, (1, HIDDEN), jnp.float32)
    return conv_w, w_full, patch_b


# ---------------- pure-JAX reference (for correctness check) ----------------
def _reference(x_nchw, conv_w, patch_b):
    y = lax.conv_general_dilated(
        x_nchw, conv_w, window_strides=(PATCH_SIZE, PATCH_SIZE), padding="VALID",
        dimension_numbers=("NCHW", "OIHW", "NCHW"))
    y = y + patch_b.reshape(1, HIDDEN, 1, 1)
    return jnp.mean(y, axis=(2, 3))        # AdaptiveAvgPool2d((1,1)) + view


if __name__ == "__main__":
    root = jax.random.PRNGKey(0)
    pkey, xkey = jax.random.split(root)
    conv_w, w_full, patch_b = init_params(pkey)
    x = jax.random.normal(xkey, (BATCH, IN_CHANNELS, IMG_SIZE, IMG_SIZE), jnp.float32)

    embeddings, features = embeddings_forward(x, w_full, patch_b)
    jax.block_until_ready(embeddings)

    assert embeddings.shape == (BATCH, HIDDEN)
    assert features is None

    ref = _reference(x, conv_w, patch_b)
    assert jnp.allclose(embeddings, ref, atol=1e-3, rtol=1e-3), \
        float(jnp.max(jnp.abs(embeddings - ref)))

    print("KERNEL_OK")
</pallas_src>

<mosaic_0001>
module attributes {stable_mosaic.version = 11 : i64} {
  func.func @_embeddings_kernel(%arg0: memref<2x256xf32, #tpu.memory_space<vmem>>, %arg1: memref<256x32xf32, #tpu.memory_space<vmem>>, %arg2: memref<1x32xf32, #tpu.memory_space<vmem>>, %arg3: memref<2x32xf32, #tpu.memory_space<vmem>>) attributes {dimension_semantics = [], scalar_prefetch = 0 : i64, scratch_operands = 0 : i64, tpu.core_type = #tpu.core_type<tc>} {
    %c0 = arith.constant 0 : index
    %c0_0 = arith.constant 0 : index
    %0 = vector.load %arg0[%c0, %c0_0] : memref<2x256xf32, #tpu.memory_space<vmem>>, vector<2x256xf32>
    %c0_1 = arith.constant 0 : index
    %c0_2 = arith.constant 0 : index
    %1 = vector.load %arg1[%c0_1, %c0_2] : memref<256x32xf32, #tpu.memory_space<vmem>>, vector<256x32xf32>
    %cst = arith.constant dense<0.000000e+00> : vector<2x32xf32>
    %2 = tpu.matmul %0, %1, %cst {dimension_numbers = #tpu.dot_dimension_numbers<[1], [0], [0], [1], [0, 0, 1, 1], [], []>} : vector<2x256xf32>, vector<256x32xf32>, vector<2x32xf32> -> vector<2x32xf32>
    %c0_3 = arith.constant 0 : index
    %c0_4 = arith.constant 0 : index
    %3 = vector.load %arg2[%c0_3, %c0_4] : memref<1x32xf32, #tpu.memory_space<vmem>>, vector<1x32xf32>
    %4 = vector.broadcast %3 : vector<1x32xf32> to vector<2x32xf32>
    %5 = arith.addf %2, %4 : vector<2x32xf32>
    %c0_5 = arith.constant 0 : index
    %c0_6 = arith.constant 0 : index
    %6 = vector.load %arg3[%c0_5, %c0_6] : memref<2x32xf32, #tpu.memory_space<vmem>>, vector<2x32xf32>
    tpu.vector_store %arg3[%c0_5, %c0_6], %5 {strides = array<i32>} : memref<2x32xf32, #tpu.memory_space<vmem>>, vector<2x32xf32>,
    return
  }
}

</mosaic_0001>

<llo_original>
// kernel: embeddings_forward.1
$region0: #{embeddings_forward.1}
  #allocation0 [shape = 'u32[]', space=smem, size = 0x4, offset = 0x4, fixed_abs, tag = 'smem constant byte address 0x4 - core index']
  #allocation1 [shape = 'u32[144,128]{1,0:T(1,128)}', space=vmem, size = 0x12000, scoped, tag = 'internal scratch']
  %s0 = inlined_call_operand.vmem [shape: f32[2,256], index: 0, kind: input, shape index: {}]
  %s1 = inlined_call_operand.vmem [shape: f32[256,32], index: 1, kind: input, shape index: {}]
  %s2 = inlined_call_operand.vmem [shape: f32[1,32], index: 2, kind: input, shape index: {}]
  %s3 = inlined_call_operand.hbm [shape: f32[2,32], index: 3, kind: output, shape index: {}]
  %s4 = sld [smem:[#allocation0]]
  $region22: #{embeddings_forward.1} parent=0
    _
  %s6 = ssub.s32 1, %s4
  %s7 = scalar_select 0, %s6, %s4
  $region1: #{embeddings_forward.1} parent=0
    #allocation2 [shape = 'u8[1024]{0}', space=vmem, size = 0x400, scoped, tag = 'output window, operand 0, single buffered']
    #allocation3 [shape = 's32[1]{0}', space=sflag, size = 0x4, scoped, tag = 'scoped memory for embeddings_forward.1']
    %8 = vsyncpa [#allocation3], 0
    // Predicated region
    $region2: #{embeddings_forward.1} parent=1 // pred_check
      _
    $region3: #{embeddings_forward.1} parent=1 // pred_check_branch
      %10 = sbr.rel (0) target = $region5
    $region4: #{embeddings_forward.1} parent=1 // pred_region
      _
    $region5: #{embeddings_forward.1} parent=1 // pred_fallthru
      _
    // Predicated region
    $region6: #{embeddings_forward.1} parent=1 // pred_check
      _
    $region7: #{embeddings_forward.1} parent=1 // pred_check_branch
      %12 = sbr.rel (0) target = $region9
    $region8: #{embeddings_forward.1} parent=1 // pred_region
      _
    $region9: #{embeddings_forward.1} parent=1 // pred_fallthru
      _
    // Predicated region
    $region10: #{embeddings_forward.1} parent=1 // pred_check
      _
    $region11: #{embeddings_forward.1} parent=1 // pred_check_branch
      %14 = sbr.rel (0) target = $region13
    $region12: #{embeddings_forward.1} parent=1 // pred_region
      _
    $region13: #{embeddings_forward.1} parent=1 // pred_fallthru
      _
    %v15 = vld [vmem:[%s0] sm:$0xf]
    %v16 = vld [vmem:[%s1] sm:$0xff]
    %v17 = vld [vmem:[%s1 + $0x8] sm:$0xff]
    %v18 = vld [vmem:[%s1 + $0x10] sm:$0xff]
    %v19 = vld [vmem:[%s1 + $0x18] sm:$0xff]
    %v20 = vld [vmem:[%s1 + $0x20] sm:$0xff]
    %v21 = vld [vmem:[%s1 + $0x28] sm:$0xff]
    %v22 = vld [vmem:[%s1 + $0x30] sm:$0xff]
    %v23 = vld [vmem:[%s1 + $0x38] sm:$0xff]
    %v24 = vld [vmem:[%s1 + $0x40] sm:$0xff]
    %v25 = vld [vmem:[%s1 + $0x48] sm:$0xff]
    %v26 = vld [vmem:[%s1 + $0x50] sm:$0xff]
    %v27 = vld [vmem:[%s1 + $0x58] sm:$0xff]
    %v28 = vld [vmem:[%s1 + $0x60] sm:$0xff]
    %v29 = vld [vmem:[%s1 + $0x68] sm:$0xff]
    %v30 = vld [vmem:[%s1 + $0x70] sm:$0xff]
    %v31 = vld [vmem:[%s1 + $0x78] sm:$0xff]
    %v32 = vld [vmem:[%s1 + $0x80] sm:$0xff]
    %v33 = vld [vmem:[%s1 + $0x88] sm:$0xff]
    %v34 = vld [vmem:[%s1 + $0x90] sm:$0xff]
    %v35 = vld [vmem:[%s1 + $0x98] sm:$0xff]
    %v36 = vld [vmem:[%s1 + $0xa0] sm:$0xff]
    %v37 = vld [vmem:[%s1 + $0xa8] sm:$0xff]
    %v38 = vld [vmem:[%s1 + $0xb0] sm:$0xff]
    %v39 = vld [vmem:[%s1 + $0xb8] sm:$0xff]
    %v40 = vld [vmem:[%s1 + $0xc0] sm:$0xff]
    %v41 = vld [vmem:[%s1 + $0xc8] sm:$0xff]
    %v42 = vld [vmem:[%s1 + $0xd0] sm:$0xff]
    %v43 = vld [vmem:[%s1 + $0xd8] sm:$0xff]
    %v44 = vld [vmem:[%s1 + $0xe0] sm:$0xff]
    %v45 = vld [vmem:[%s1 + $0xe8] sm:$0xff]
    %v46 = vld [vmem:[%s1 + $0xf0] sm:$0xff]
    %v47 = vld [vmem:[%s1 + $0xf8] sm:$0xff]
    %v48 = vld [vmem:[%s2] sm:$0x1]
    %v50 = vlaneseq
    %v51 = vshrl.u32 %v50, 7
    %v52 = vsub.s32 0, %v51
    %v53 = vrot.slane %v48, %v52
    %v57 = vunpack.c.l.s4 1983009808
    %v58 = vunpack.c.0.s8 %v57
    %v59 = vlaneseq
    %v60 = vshrl.u32 %v59, 7
    %v61 = vsub.s32 %v58, %v60
    %v62 = vrot.slane %v15, %v61
    %v63 = vcombine.high %v62, %v62
    %66 = vmatprep.subr.mxu0 0.0
    %67 = vmatpush1.msra.mxu0 %v16
    %68 = vmatprep.subr.mxu0 0.0
    %69 = vmatpush1.msra.mxu0 %v17
    %70 = vmatprep.subr.mxu0 0.0
    %71 = vmatpush1.msra.mxu0 %v18
    %72 = vmatprep.subr.mxu0 0.0
    %73 = vmatpush1.msra.mxu0 %v19
    %74 = vmatprep.subr.mxu0 0.0
    %75 = vmatpush1.msra.mxu0 %v20
    %76 = vmatprep.subr.mxu0 0.0
    %77 = vmatpush1.msra.mxu0 %v21
    %78 = vmatprep.subr.mxu0 0.0
    %79 = vmatpush1.msra.mxu0 %v22
    %80 = vmatprep.subr.mxu0 0.0
    %81 = vmatpush1.msra.mxu0 %v23
    %82 = vmatprep.subr.mxu0 0.0
    %83 = vmatpush1.msra.mxu0 %v24
    %84 = vmatprep.subr.mxu0 0.0
    %85 = vmatpush1.msra.mxu0 %v25
    %86 = vmatprep.subr.mxu0 0.0
    %87 = vmatpush1.msra.mxu0 %v26
    %88 = vmatprep.subr.mxu0 0.0
    %89 = vmatpush1.msra.mxu0 %v27
    %90 = vmatprep.subr.mxu0 0.0
    %91 = vmatpush1.msra.mxu0 %v28
    %92 = vmatprep.subr.mxu0 0.0
    %93 = vmatpush1.msra.mxu0 %v29
    %94 = vmatprep.subr.mxu0 0.0
    %95 = vmatpush1.msra.mxu0 %v30
    %96 = vmatprep.subr.mxu0 0.0
    %97 = vmatpush1.msra.mxu0 %v31
    %98 = vmatprep.subr.mxu0 0.0
    %99 = vmatpush1.msra.mxu0 %v32
    %100 = vmatprep.subr.mxu0 0.0
    %101 = vmatpush1.msra.mxu0 %v33
    %102 = vmatprep.subr.mxu0 0.0
    %103 = vmatpush1.msra.mxu0 %v34
    %104 = vmatprep.subr.mxu0 0.0
    %105 = vmatpush1.msra.mxu0 %v35
    %106 = vmatprep.subr.mxu0 0.0
    %107 = vmatpush1.msra.mxu0 %v36
    %108 = vmatprep.subr.mxu0 0.0
    %109 = vmatpush1.msra.mxu0 %v37
    %110 = vmatprep.subr.mxu0 0.0
    %111 = vmatpush1.msra.mxu0 %v38
    %112 = vmatprep.subr.mxu0 0.0
    %113 = vmatpush1.msra.mxu0 %v39
    %114 = vmatprep.subr.mxu0 0.0
    %115 = vmatpush1.msra.mxu0 %v40
    %116 = vmatprep.subr.mxu0 0.0
    %117 = vmatpush1.msra.mxu0 %v41
    %118 = vmatprep.subr.mxu0 0.0
    %119 = vmatpush1.msra.mxu0 %v42
    %120 = vmatprep.subr.mxu0 0.0
    %121 = vmatpush1.msra.mxu0 %v43
    %122 = vmatprep.subr.mxu0 0.0
    %123 = vmatpush1.msra.mxu0 %v44
    %124 = vmatprep.subr.mxu0 0.0
    %125 = vmatpush1.msra.mxu0 %v45
    %126 = vmatprep.subr.mxu0 0.0
    %127 = vmatpush1.msra.mxu0 %v46
    %128 = vmatprep.subr.mxu0 0.0
    %129 = vmatpush1.msra.mxu0 %v47
    %130 = vmatprep.mubr.f32.mxu0 %v63
    %131 = vmatmul.mubr.f32.gmra.mrb[0].mxu0 %v62
    %v132 = vpop.f32.mrb[0].mxu0
    %v133 = vadd.f32 %v53, %v132
    %v134 = vpop.f32.mrb[0].mxu0
    %135 = vdwg.mxu0
    %vm136 = vcmask 254976
    %137 = vst.msk [vmem:[#allocation2] sm:$0x3] %vm136, %v133
    // Predicated region
    $region14: #{embeddings_forward.1} parent=1 // pred_check
      _
    $region15: #{embeddings_forward.1} parent=1 // pred_check_branch
      %139 = sbr.rel (0) target = $region17
    $region16: #{embeddings_forward.1} parent=1 // pred_region
      %s141 = ssub.s32 32, 32
      %142 = vsyncadd [#allocation3], %s141
      %s144 = sshll.u32 [#allocation2], 4
      %s145 = int_to_ptr.vmem [resolvable:$true] %s144
      %147 = dma.vmem_to_hbm [thread:$0]  %s145, 32, %s3, [#allocation3]
    $region17: #{embeddings_forward.1} parent=1 // pred_fallthru
      _
    // Predicated region
    $region18: #{embeddings_forward.1} parent=1 // pred_check
      _
    $region19: #{embeddings_forward.1} parent=1 // pred_check_branch
      %149 = sbr.rel (0) target = $region21
    $region20: #{embeddings_forward.1} parent=1 // pred_region
      %150 = dma.done [#allocation3], 32
    $region21: #{embeddings_forward.1} parent=1 // pred_fallthru
      _
    %151 = vsyncpa [#allocation3], 1

</llo_original>
